<compile_context>
chip_gen: v6e
topology: v6e:2x2x1
jax: 0.10.0
libtpu: 0.0.40
codegen_flags: <defaults>
</compile_context>

<pallas_src>
import functools

import jax
import jax.numpy as jnp
import numpy as np
from jax.experimental import pallas as pl
from jax.experimental.pallas import tpu as pltpu

LEAKY_SLOPE = 0.01   # nn.LeakyReLU default negative_slope
LANE = 128           # TPU lane width


def _round_up(n, m):
    return ((n + m - 1) // m) * m


def _vmem_capacity_bytes():
    try:
        cap = int(pltpu.get_tpu_info().vmem_capacity_bytes)
        if cap > 0:
            return cap
    except Exception:
        pass
    return 64 << 20   # conservative default (v7x per-TensorCore VMEM)


# ---------------------------------------------------------------------------
# Kernel: one grid step = one (ensemble member, batch tile) pair.
# ---------------------------------------------------------------------------
def _member_mlp_kernel(depth, *refs):
    """refs layout (leading E axis of every param squeezed by its BlockSpec):
      refs[0]                   x_ref   (TB, F)                 compute dtype
      refs[1+2i], refs[2+2i]    w_i (in_i, Hp_i), b_i (1, Hp_i) f32 bias
      refs[1+2*depth+g]         wh_g: wh_0 (F, O_pad), wh_g (Hp_g, O_pad)
      refs[-2]                  bh      (1, O_pad)              float32
      refs[-1]                  out_ref (TB, O_pad)             float32
    """
    x_ref = refs[0]
    out_ref = refs[-1]
    bh_ref = refs[-2]
    head_w_refs = refs[1 + 2 * depth: 2 + 3 * depth]

    x = x_ref[...]                                           # (TB, F)

    # Head contribution of the x skip connection.
    acc = jnp.dot(x, head_w_refs[0][...],
                  preferred_element_type=jnp.float32) + bh_ref[...]

    h = x
    for i in range(depth):
        w = refs[1 + 2 * i][...]
        b = refs[2 + 2 * i][...]
        z = jnp.dot(h, w, preferred_element_type=jnp.float32) + b
        h_f32 = jnp.maximum(z, LEAKY_SLOPE * z)              # LeakyReLU (f32)
        h = h_f32.astype(x.dtype)                            # MXU operand dtype
        acc = acc + jnp.dot(h, head_w_refs[i + 1][...],
                            preferred_element_type=jnp.float32)

    out_ref[...] = acc.astype(out_ref.dtype)


# ---------------------------------------------------------------------------
# Wrapper-side weight packing (once, outside the kernel)
# ---------------------------------------------------------------------------
def pack_params(params, compute_dtype=jnp.float32):
    """Pre-transpose + lane-pad torch-layout ensemble params.

    torch layout:  ws[i]: (E, H_i, in_i)   bs[i]: (E, 1, H_i)
                   w_head: (E, O, P)       b_head: (E, 1, O),  P = F + sum(H)
    """
    ws, bs = params["ws"], params["bs"]
    w_head, b_head = params["w_head"], params["b_head"]
    E, O, P = (int(d) for d in w_head.shape)
    depth = len(ws)
    hidden = [int(w.shape[1]) for w in ws]
    F = int(ws[0].shape[2])
    assert P == F + sum(hidden)

    hp = [_round_up(h, LANE) for h in hidden]     # lane-padded hidden sizes
    o_pad = _round_up(O, LANE)                    # lane-padded head output

    packed_w, packed_b = [], []
    for i, (w, b) in enumerate(zip(ws, bs)):
        in_d = F if i == 0 else hidden[i - 1]
        in_pad = F if i == 0 else hp[i - 1]
        wt = jnp.transpose(w, (0, 2, 1))          # (E, in_i, H_i)
        wt = jnp.pad(wt, ((0, 0), (0, in_pad - in_d), (0, hp[i] - hidden[i])))
        packed_w.append(wt.astype(compute_dtype))
        bt = jnp.pad(b, ((0, 0), (0, 0), (0, hp[i] - hidden[i])))
        packed_b.append(bt.astype(jnp.float32))   # (E, 1, Hp_i)

    # Split head weight along its input (P) axis into (x, h1, ..., hd) groups.
    head_w, off = [], 0
    for size, size_pad in zip([F] + hidden, [F] + hp):
        wg = jnp.transpose(w_head[:, :, off:off + size], (0, 2, 1))  # (E,size,O)
        wg = jnp.pad(wg, ((0, 0), (0, size_pad - size), (0, o_pad - O)))
        head_w.append(wg.astype(compute_dtype))
        off += size
    head_b = jnp.pad(b_head, ((0, 0), (0, 0), (0, o_pad - O)))
    head_b = head_b.astype(jnp.float32)           # (E, 1, O_pad)

    return {
        "depth": depth, "E": E, "F": F, "O": O, "O_pad": o_pad,
        "compute_dtype": compute_dtype,
        "w": packed_w, "b": packed_b, "head_w": head_w, "head_b": head_b,
    }


# ---------------------------------------------------------------------------
# Forward
# ---------------------------------------------------------------------------
def mlp_ensemble_forward(x, packed, *, batch_tile=512):
    """x: (B, F). Returns (B, E*O) f32 == torch.cat([net(x) for net in nets], -1)."""
    B, F = x.shape
    assert F == packed["F"]
    E, depth = packed["E"], packed["depth"]
    O, O_pad = packed["O"], packed["O_pad"]
    cdt = packed["compute_dtype"]
    itemsize = jnp.dtype(cdt).itemsize

    member_params = packed["w"] + packed["head_w"]
    member_biases = packed["b"] + [packed["head_b"]]
    # Bytes of ONE member's params (the pipeline double-buffers these).
    w_bytes = sum(int(np.prod(a.shape[1:])) * a.dtype.itemsize
                  for a in member_params + member_biases)

    # Batch tile: as large as the VMEM budget allows (amortize per-step
    # overhead), bounded so smaller-VMEM parts (v7x: 64 MiB) still fit.
    vmem_cap = _vmem_capacity_bytes()
    per_row = 2 * (F * itemsize + O_pad * 4)          # double-buffered x + out
    avail = int(0.6 * vmem_cap) - 2 * w_bytes
    tb_cap = max(8, (avail // max(per_row, 1)) // 8 * 8) if avail > 0 else 8
    tb = min(batch_tile, tb_cap, _round_up(B, 8))
    if E == 1 and B > 8:
        # Keep >= 2 parallel grid steps so both v7x TensorCores get work.
        tb = min(tb, _round_up((B + 1) // 2, 8))
    tb = max(8, (tb // 8) * 8)
    b_pad = _round_up(B, tb)

    x_p = x.astype(cdt)
    if b_pad != B:
        x_p = jnp.pad(x_p, ((0, b_pad - B), (0, 0)))

    def member_spec(arr):     # squeeze the leading ensemble axis
        return pl.BlockSpec((None,) + tuple(arr.shape[1:]),
                            lambda e, b: (e, 0, 0))

    operands = [x_p]
    in_specs = [pl.BlockSpec((tb, F), lambda e, b: (b, 0))]
    for w, bias in zip(packed["w"], packed["b"]):
        operands += [w, bias]
        in_specs += [member_spec(w), member_spec(bias)]
    for w in packed["head_w"]:
        operands.append(w)
        in_specs.append(member_spec(w))
    operands.append(packed["head_b"])
    in_specs.append(member_spec(packed["head_b"]))

    out_specs = pl.BlockSpec((tb, O_pad), lambda e, b: (b, e))

    flops_per_row = sum(2 * int(a.shape[1]) * int(a.shape[2])
                        for a in member_params)
    cost = pl.CostEstimate(
        flops=int(E) * int(b_pad) * int(flops_per_row),
        transcendentals=0,
        bytes_accessed=int(E * b_pad * F * itemsize       # x streamed per member
                           + E * w_bytes                  # all member params
                           + b_pad * E * O_pad * 4))      # output
    vmem_limit = int(min(max(2 * w_bytes + tb * per_row + (4 << 20), 32 << 20),
                         int(0.9 * vmem_cap)))

    kernel = functools.partial(_member_mlp_kernel, depth)

    out = pl.pallas_call(
        kernel,
        out_shape=jax.ShapeDtypeStruct((b_pad, E * O_pad), jnp.float32),
        grid_spec=pltpu.PrefetchScalarGridSpec(
            num_scalar_prefetch=0,
            grid=(E, b_pad // tb),       # batch innermost: a member's weights
            in_specs=in_specs,           # stay resident across its batch tiles
            out_specs=out_specs,
        ),
        compiler_params=pltpu.CompilerParams(
            dimension_semantics=("parallel", "parallel"),
            vmem_limit_bytes=vmem_limit,
        ),
        cost_estimate=cost,
    )(*operands)

    # Drop batch / lane padding; produce the torch.cat(dim=-1) layout.
    out = out[:B].reshape(B, E, O_pad)[:, :, :O].reshape(B, E * O)
    return out


# ---------------------------------------------------------------------------
# Deterministic parameter init (xavier_uniform_ weights, zero biases),
# stored torch-style: (E, out, in) weights, (E, 1, out) biases.
# ---------------------------------------------------------------------------
def init_params(key, in_features, out_features, hidden_sizes, ensemble_size):
    def xavier(k, fan_out, fan_in):
        bound = np.sqrt(6.0 / (fan_in + fan_out))
        return jax.random.uniform(k, (fan_out, fan_in), jnp.float32,
                                  minval=-bound, maxval=bound)

    E = ensemble_size
    depth = len(hidden_sizes)
    penult = in_features + sum(hidden_sizes)
    keys = jax.random.split(key, E * (depth + 1))

    ws, bs = [], []
    for i in range(depth):
        fan_in = hidden_sizes[i - 1] if i else in_features
        fan_out = hidden_sizes[i]
        w_e = [xavier(keys[e * (depth + 1) + i], fan_out, fan_in)
               for e in range(E)]
        ws.append(jnp.stack(w_e, axis=0))                   # (E, H_i, in_i)
        bs.append(jnp.zeros((E, 1, fan_out), jnp.float32))  # (E, 1, H_i)

    wh_e = [xavier(keys[e * (depth + 1) + depth], out_features, penult)
            for e in range(E)]
    w_head = jnp.stack(wh_e, axis=0)                        # (E, O, P)
    b_head = jnp.zeros((E, 1, out_features), jnp.float32)   # (E, 1, O)
    return {"ws": ws, "bs": bs, "w_head": w_head, "b_head": b_head}


# ---------------------------------------------------------------------------
# Pure-JAX reference (mirrors the PyTorch forward exactly)
# ---------------------------------------------------------------------------
def reference_forward(x, params):
    outs = []
    E = params["w_head"].shape[0]
    for e in range(E):
        h = x
        feats = [x]
        for w, b in zip(params["ws"], params["bs"]):
            z = h @ w[e].T + b[e]
            h = jnp.where(z > 0, z, LEAKY_SLOPE * z)
            feats.append(h)
        cat = jnp.concatenate(feats, axis=-1)
        outs.append(cat @ params["w_head"][e].T + params["b_head"][e])
    return jnp.concatenate(outs, axis=-1)


if __name__ == "__main__":
    batch = 8
    in_features = 16
    hidden_sizes = (32, 32)
    out_features = 8
    ensemble_size = 3

    key = jax.random.PRNGKey(0)
    kx, kx2, kp = jax.random.split(key, 3)
    x = jax.random.normal(kx, (batch, in_features), jnp.float32)
    params = init_params(kp, in_features, out_features, hidden_sizes,
                         ensemble_size)
    ref = reference_forward(x, params)

    # f32 path (torch-parity semantics)
    packed_f32 = pack_params(params, jnp.float32)
    out = jax.block_until_ready(mlp_ensemble_forward(x, packed_f32))
    assert out.shape == (batch, ensemble_size * out_features), out.shape
    np.testing.assert_allclose(np.asarray(out), np.asarray(ref),
                               rtol=1e-4, atol=1e-4)

    # Ragged batch + multiple batch tiles (exercises padding / grid tiling)
    x_big = jax.random.normal(kx2, (37, in_features), jnp.float32)
    ref_big = reference_forward(x_big, params)
    out_big = jax.block_until_ready(
        mlp_ensemble_forward(x_big, packed_f32, batch_tile=16))
    np.testing.assert_allclose(np.asarray(out_big), np.asarray(ref_big),
                               rtol=1e-4, atol=1e-4)

    # bf16 MXU path (fast path on v6e/v7x): bf16 operands, f32 accumulate.
    packed_bf16 = pack_params(params, jnp.bfloat16)
    out_bf16 = jax.block_until_ready(mlp_ensemble_forward(x, packed_bf16))
    assert out_bf16.shape == out.shape
    np.testing.assert_allclose(np.asarray(out_bf16), np.asarray(ref),
                               rtol=1e-1, atol=1e-1)

    print("KERNEL_OK")
</pallas_src>

<mosaic_0001>
module attributes {stable_mosaic.version = 11 : i64} {
  func.func @_member_mlp_kernel(%arg0: i32, %arg1: i32, %arg2: memref<8x16xf32, #tpu.memory_space<vmem>>, %arg3: memref<1x16x128xf32, #tpu.memory_space<vmem>>, %arg4: memref<1x1x128xf32, #tpu.memory_space<vmem>>, %arg5: memref<1x128x128xf32, #tpu.memory_space<vmem>>, %arg6: memref<1x1x128xf32, #tpu.memory_space<vmem>>, %arg7: memref<1x16x128xf32, #tpu.memory_space<vmem>>, %arg8: memref<1x128x128xf32, #tpu.memory_space<vmem>>, %arg9: memref<1x128x128xf32, #tpu.memory_space<vmem>>, %arg10: memref<1x1x128xf32, #tpu.memory_space<vmem>>, %arg11: memref<8x128xf32, #tpu.memory_space<vmem>>) attributes {dimension_semantics = [#tpu.dimension_semantics<parallel>, #tpu.dimension_semantics<parallel>], iteration_bounds = array<i64: 3, 1>, scalar_prefetch = 0 : i64, scratch_operands = 0 : i64, tpu.core_type = #tpu.core_type<tc>, window_params = [{transform_indices = @transform_0, window_bounds = array<i64: 8, 16>}, {transform_indices = @transform_1, window_bounds = array<i64: 1, 16, 128>}, {transform_indices = @transform_2, window_bounds = array<i64: 1, 1, 128>}, {transform_indices = @transform_3, window_bounds = array<i64: 1, 128, 128>}, {transform_indices = @transform_4, window_bounds = array<i64: 1, 1, 128>}, {transform_indices = @transform_5, window_bounds = array<i64: 1, 16, 128>}, {transform_indices = @transform_6, window_bounds = array<i64: 1, 128, 128>}, {transform_indices = @transform_7, window_bounds = array<i64: 1, 128, 128>}, {transform_indices = @transform_8, window_bounds = array<i64: 1, 1, 128>}, {transform_indices = @transform_9, window_bounds = array<i64: 8, 128>}]} {
    %c0 = arith.constant 0 : index
    %c0_0 = arith.constant 0 : index
    %0 = vector.load %arg2[%c0, %c0_0] : memref<8x16xf32, #tpu.memory_space<vmem>>, vector<8x16xf32>
    %c0_1 = arith.constant 0 : index
    %c0_2 = arith.constant 0 : index
    %c0_3 = arith.constant 0 : index
    %1 = vector.load %arg7[%c0_1, %c0_2, %c0_3] : memref<1x16x128xf32, #tpu.memory_space<vmem>>, vector<1x16x128xf32>
    %2 = vector.shape_cast %1 : vector<1x16x128xf32> to vector<16x128xf32>
    %cst = arith.constant dense<0.000000e+00> : vector<8x128xf32>
    %3 = tpu.matmul %0, %2, %cst {dimension_numbers = #tpu.dot_dimension_numbers<[1], [0], [0], [1], [0, 0, 1, 1], [], []>} : vector<8x16xf32>, vector<16x128xf32>, vector<8x128xf32> -> vector<8x128xf32>
    %c0_4 = arith.constant 0 : index
    %c0_5 = arith.constant 0 : index
    %c0_6 = arith.constant 0 : index
    %4 = vector.load %arg10[%c0_4, %c0_5, %c0_6] : memref<1x1x128xf32, #tpu.memory_space<vmem>>, vector<1x1x128xf32>
    %5 = vector.shape_cast %4 : vector<1x1x128xf32> to vector<1x128xf32>
    %6 = vector.broadcast %5 : vector<1x128xf32> to vector<8x128xf32>
    %7 = arith.addf %3, %6 : vector<8x128xf32>
    %c0_7 = arith.constant 0 : index
    %c0_8 = arith.constant 0 : index
    %c0_9 = arith.constant 0 : index
    %8 = vector.load %arg3[%c0_7, %c0_8, %c0_9] : memref<1x16x128xf32, #tpu.memory_space<vmem>>, vector<1x16x128xf32>
    %9 = vector.shape_cast %8 : vector<1x16x128xf32> to vector<16x128xf32>
    %c0_10 = arith.constant 0 : index
    %c0_11 = arith.constant 0 : index
    %c0_12 = arith.constant 0 : index
    %10 = vector.load %arg4[%c0_10, %c0_11, %c0_12] : memref<1x1x128xf32, #tpu.memory_space<vmem>>, vector<1x1x128xf32>
    %11 = vector.shape_cast %10 : vector<1x1x128xf32> to vector<1x128xf32>
    %cst_13 = arith.constant dense<0.000000e+00> : vector<8x128xf32>
    %12 = tpu.matmul %0, %9, %cst_13 {dimension_numbers = #tpu.dot_dimension_numbers<[1], [0], [0], [1], [0, 0, 1, 1], [], []>} : vector<8x16xf32>, vector<16x128xf32>, vector<8x128xf32> -> vector<8x128xf32>
    %13 = vector.broadcast %11 : vector<1x128xf32> to vector<8x128xf32>
    %14 = arith.addf %12, %13 : vector<8x128xf32>
    %cst_14 = arith.constant 0.00999999977 : f32
    %15 = vector.broadcast %cst_14 : f32 to vector<8x128xf32>
    %16 = arith.mulf %15, %14 : vector<8x128xf32>
    %17 = arith.maximumf %14, %16 : vector<8x128xf32>
    %c0_15 = arith.constant 0 : index
    %c0_16 = arith.constant 0 : index
    %c0_17 = arith.constant 0 : index
    %18 = vector.load %arg8[%c0_15, %c0_16, %c0_17] : memref<1x128x128xf32, #tpu.memory_space<vmem>>, vector<1x128x128xf32>
    %19 = vector.shape_cast %18 : vector<1x128x128xf32> to vector<128x128xf32>
    %cst_18 = arith.constant dense<0.000000e+00> : vector<8x128xf32>
    %20 = tpu.matmul %17, %19, %cst_18 {dimension_numbers = #tpu.dot_dimension_numbers<[1], [0], [0], [1], [0, 0, 1, 1], [], []>} : vector<8x128xf32>, vector<128x128xf32>, vector<8x128xf32> -> vector<8x128xf32>
    %21 = arith.addf %7, %20 : vector<8x128xf32>
    %c0_19 = arith.constant 0 : index
    %c0_20 = arith.constant 0 : index
    %c0_21 = arith.constant 0 : index
    %22 = vector.load %arg5[%c0_19, %c0_20, %c0_21] : memref<1x128x128xf32, #tpu.memory_space<vmem>>, vector<1x128x128xf32>
    %23 = vector.shape_cast %22 : vector<1x128x128xf32> to vector<128x128xf32>
    %c0_22 = arith.constant 0 : index
    %c0_23 = arith.constant 0 : index
    %c0_24 = arith.constant 0 : index
    %24 = vector.load %arg6[%c0_22, %c0_23, %c0_24] : memref<1x1x128xf32, #tpu.memory_space<vmem>>, vector<1x1x128xf32>
    %25 = vector.shape_cast %24 : vector<1x1x128xf32> to vector<1x128xf32>
    %cst_25 = arith.constant dense<0.000000e+00> : vector<8x128xf32>
    %26 = tpu.matmul %17, %23, %cst_25 {dimension_numbers = #tpu.dot_dimension_numbers<[1], [0], [0], [1], [0, 0, 1, 1], [], []>} : vector<8x128xf32>, vector<128x128xf32>, vector<8x128xf32> -> vector<8x128xf32>
    %27 = vector.broadcast %25 : vector<1x128xf32> to vector<8x128xf32>
    %28 = arith.addf %26, %27 : vector<8x128xf32>
    %cst_26 = arith.constant 0.00999999977 : f32
    %29 = vector.broadcast %cst_26 : f32 to vector<8x128xf32>
    %30 = arith.mulf %29, %28 : vector<8x128xf32>
    %31 = arith.maximumf %28, %30 : vector<8x128xf32>
    %c0_27 = arith.constant 0 : index
    %c0_28 = arith.constant 0 : index
    %c0_29 = arith.constant 0 : index
    %32 = vector.load %arg9[%c0_27, %c0_28, %c0_29] : memref<1x128x128xf32, #tpu.memory_space<vmem>>, vector<1x128x128xf32>
    %33 = vector.shape_cast %32 : vector<1x128x128xf32> to vector<128x128xf32>
    %cst_30 = arith.constant dense<0.000000e+00> : vector<8x128xf32>
    %34 = tpu.matmul %31, %33, %cst_30 {dimension_numbers = #tpu.dot_dimension_numbers<[1], [0], [0], [1], [0, 0, 1, 1], [], []>} : vector<8x128xf32>, vector<128x128xf32>, vector<8x128xf32> -> vector<8x128xf32>
    %35 = arith.addf %21, %34 : vector<8x128xf32>
    %c0_31 = arith.constant 0 : index
    %c0_32 = arith.constant 0 : index
    %36 = vector.load %arg11[%c0_31, %c0_32] : memref<8x128xf32, #tpu.memory_space<vmem>>, vector<8x128xf32>
    tpu.vector_store %arg11[%c0_31, %c0_32], %35 {strides = array<i32>} : memref<8x128xf32, #tpu.memory_space<vmem>>, vector<8x128xf32>,
    return
  }
  func.func @transform_0(%arg0: i32, %arg1: i32) -> (i32, i32) {
    %c0_i32 = arith.constant 0 : i32
    %c0_i32_0 = arith.constant 0 : i32
    return %arg1, %c0_i32 : i32, i32
  }
  func.func @transform_1(%arg0: i32, %arg1: i32) -> (i32, i32, i32) {
    %c0_i32 = arith.constant 0 : i32
    %c0_i32_0 = arith.constant 0 : i32
    %c0_i32_1 = arith.constant 0 : i32
    return %arg0, %c0_i32, %c0_i32_0 : i32, i32, i32
  }
  func.func @transform_2(%arg0: i32, %arg1: i32) -> (i32, i32, i32) {
    %c0_i32 = arith.constant 0 : i32
    %c0_i32_0 = arith.constant 0 : i32
    %c0_i32_1 = arith.constant 0 : i32
    return %arg0, %c0_i32, %c0_i32_0 : i32, i32, i32
  }
  func.func @transform_3(%arg0: i32, %arg1: i32) -> (i32, i32, i32) {
    %c0_i32 = arith.constant 0 : i32
    %c0_i32_0 = arith.constant 0 : i32
    %c0_i32_1 = arith.constant 0 : i32
    return %arg0, %c0_i32, %c0_i32_0 : i32, i32, i32
  }
  func.func @transform_4(%arg0: i32, %arg1: i32) -> (i32, i32, i32) {
    %c0_i32 = arith.constant 0 : i32
    %c0_i32_0 = arith.constant 0 : i32
    %c0_i32_1 = arith.constant 0 : i32
    return %arg0, %c0_i32, %c0_i32_0 : i32, i32, i32
  }
  func.func @transform_5(%arg0: i32, %arg1: i32) -> (i32, i32, i32) {
    %c0_i32 = arith.constant 0 : i32
    %c0_i32_0 = arith.constant 0 : i32
    %c0_i32_1 = arith.constant 0 : i32
    return %arg0, %c0_i32, %c0_i32_0 : i32, i32, i32
  }
  func.func @transform_6(%arg0: i32, %arg1: i32) -> (i32, i32, i32) {
    %c0_i32 = arith.constant 0 : i32
    %c0_i32_0 = arith.constant 0 : i32
    %c0_i32_1 = arith.constant 0 : i32
    return %arg0, %c0_i32, %c0_i32_0 : i32, i32, i32
  }
  func.func @transform_7(%arg0: i32, %arg1: i32) -> (i32, i32, i32) {
    %c0_i32 = arith.constant 0 : i32
    %c0_i32_0 = arith.constant 0 : i32
    %c0_i32_1 = arith.constant 0 : i32
    return %arg0, %c0_i32, %c0_i32_0 : i32, i32, i32
  }
  func.func @transform_8(%arg0: i32, %arg1: i32) -> (i32, i32, i32) {
    %c0_i32 = arith.constant 0 : i32
    %c0_i32_0 = arith.constant 0 : i32
    %c0_i32_1 = arith.constant 0 : i32
    return %arg0, %c0_i32, %c0_i32_0 : i32, i32, i32
  }
  func.func @transform_9(%arg0: i32, %arg1: i32) -> (i32, i32) {
    %c0_i32 = arith.constant 0 : i32
    return %arg1, %arg0 : i32, i32
  }
}

</mosaic_0001>

<llo_original>
// kernel: tpu_custom_call.1
$region0: #{tpu_custom_call.1}
  #allocation0 [shape = 'u32[]', space=smem, size = 0x4, offset = 0x4, fixed_abs, tag = 'smem constant byte address 0x4 - core index']
  #allocation1 [shape = 'u32[144,128]{1,0:T(1,128)}', space=vmem, size = 0x12000, scoped, tag = 'internal scratch']
  %s0 = inlined_call_operand.hbm [shape: f32[8,16], index: 0, kind: input, shape index: {}]
  %s1 = inlined_call_operand.hbm [shape: f32[3,16,128], index: 1, kind: input, shape index: {}]
  %s2 = inlined_call_operand.vmem [shape: f32[3,1,128], index: 2, kind: input, shape index: {}]
  %s3 = inlined_call_operand.hbm [shape: f32[3,128,128], index: 3, kind: input, shape index: {}]
  %s4 = inlined_call_operand.vmem [shape: f32[3,1,128], index: 4, kind: input, shape index: {}]
  %s5 = inlined_call_operand.hbm [shape: f32[3,16,128], index: 5, kind: input, shape index: {}]
  %s6 = inlined_call_operand.hbm [shape: f32[3,128,128], index: 6, kind: input, shape index: {}]
  %s7 = inlined_call_operand.hbm [shape: f32[3,128,128], index: 7, kind: input, shape index: {}]
  %s8 = inlined_call_operand.vmem [shape: f32[3,1,128], index: 8, kind: input, shape index: {}]
  %s9 = inlined_call_operand.hbm [shape: f32[8,384], index: 9, kind: output, shape index: {}]
  %s10 = sld [smem:[#allocation0]]
  $region93: #{tpu_custom_call.1} parent=0
    _
  %s12 = ssub.s32 1, %s10
  %s13 = scalar_select 0, %s12, %s10
  $region1: #{tpu_custom_call.1} parent=0
    #allocation2 [shape = 'u8[4096]{0}', space=vmem, size = 0x1000, scoped, tag = 'input window, operand 0, single buffered']
    #allocation3 [shape = 's32[2]{0}', space=sflag, size = 0x8, scoped, tag = 'scoped memory for tpu_custom_call.1']
    #allocation4 [shape = 's32[2]{0}', space=sflag, size = 0x8, scoped, tag = 'scoped memory for tpu_custom_call.1']
    #allocation5 [shape = 'u8[16384]{0}', space=vmem, size = 0x4000, scoped, tag = 'input window, operand 1']
    #allocation6 [shape = 's32[2]{0}', space=sflag, size = 0x8, scoped, tag = 'scoped memory for tpu_custom_call.1']
    #allocation7 [shape = 'u8[131072]{0}', space=vmem, size = 0x20000, scoped, tag = 'input window, operand 3']
    #allocation8 [shape = 'u8[16384]{0}', space=vmem, size = 0x4000, scoped, tag = 'input window, operand 5']
    #allocation9 [shape = 's32[2]{0}', space=sflag, size = 0x8, scoped, tag = 'scoped memory for tpu_custom_call.1']
    #allocation10 [shape = 'u8[131072]{0}', space=vmem, size = 0x20000, scoped, tag = 'input window, operand 6']
    #allocation11 [shape = 'u8[131072]{0}', space=vmem, size = 0x20000, scoped, tag = 'input window, operand 7']
    #allocation12 [shape = 's32[2]{0}', space=sflag, size = 0x8, scoped, tag = 'scoped memory for tpu_custom_call.1']
    #allocation13 [shape = 'u8[8192]{0}', space=vmem, size = 0x2000, scoped, tag = 'output window, operand 0']
    %14 = vsyncpa [#allocation3], 0
    %15 = vsyncpa [#allocation6], 0
    %s16 = scalar_lea.sflag [#allocation6], 1
    %17 = vsyncpa %s16, 0
    %18 = vsyncpa [#allocation9], 0
    %s19 = scalar_lea.sflag [#allocation9], 1
    %20 = vsyncpa %s19, 0
    %21 = vsyncpa [#allocation12], 0
    %s22 = scalar_lea.sflag [#allocation12], 1
    %23 = vsyncpa %s22, 0
    %24 = vsyncpa [#allocation4], 0
    %s25 = scalar_lea.sflag [#allocation4], 1
    %26 = vsyncpa %s25, 0
    loop: start=0, step=1, limit=5
    $region2: #{tpu_custom_call.1} parent=1 // loop_pre_header
      _
    $region3: #{tpu_custom_call.1} parent=1 // loop_header
      %s28 = sphi 0, %s32
      %p29 = scmp.ge.s32.totalorder %s28, 5
      %s35 = sphi 0, %s47
      %s36 = sphi 0, %s43
      %s37 = sphi 0, %s35
      %s38 = sphi 0, %s36
      %s39 = sphi 0, %s37
      %s40 = sphi 0, %s38
      %s50 = sphi 0, %s52
      %s53 = sphi 0, %s50
      %s54 = sphi 0, %s53
      %s70 = sphi 0, %s54
      %s76 = sphi 0, %s78
      %s79 = sphi 0, %s76
      %s80 = sphi 0, %s79
      %s96 = sphi 0, %s80
      %s102 = sphi 0, %s104
      %s105 = sphi 0, %s102
      %s106 = sphi 0, %s105
      %s122 = sphi 0, %s106
      %s128 = sphi 0, %s130
      %s131 = sphi 0, %s128
      %s132 = sphi 0, %s131
      %s148 = sphi 0, %s132
      %s154 = sphi 0, %s156
      %s157 = sphi 0, %s154
      %s158 = sphi 0, %s157
      %s174 = sphi 0, %s158
      %s180 = sphi 0, %s182
      %s183 = sphi 0, %s180
      %s184 = sphi 0, %s183
      %s200 = sphi 0, %s184
      %s206 = sphi 0, %s208
      %s209 = sphi 0, %s206
      %s210 = sphi 0, %s209
      %s226 = sphi 0, %s210
      %s232 = sphi 0, %s234
      %s235 = sphi 0, %s232
      %s236 = sphi 0, %s235
      %s252 = sphi 0, %s236
      %s258 = sphi 0, %s260
      %s261 = sphi 0, %s258
      %s262 = sphi 0, %s261
      %s278 = sphi 0, %s262
      %s286 = sphi 0, %s288
      %s289 = sphi 0, %s286
      %s290 = sphi 0, %s289
      %s306 = sphi 0, %s290
    $region4: #{tpu_custom_call.1} parent=1 // loop_header_branch
      %31 = sbr.rel (%p29) target = $region8
    $region5: #{tpu_custom_call.1} parent=1 // loop_body
      %s33 = ssub.s32 %s28, 1
      %s34 = ssub.s32 %s28, 2
      %s41 = sadd.s32 1, %s36
      %p42 = scmp.ge.s32.totalorder %s41, 1
      %s43 = scalar_select %p42, 0, %s41
      %s44 = sadd.s32 1, %s35
      %s45 = scalar_select %p42, %s44, %s35
      %p46 = scmp.ge.s32.totalorder %s45, 3
      %s47 = scalar_select %p46, 0, %s45
      %s48 = ssub.s32 %s36, %s43
      %p49 = scmp.eq.s32.totalorder %s48, 0
      %s51 = sadd.s32 %s50, 1
      %s52 = scalar_select %p49, %s50, %s51
      %p55 = pneg %p49
      %p56 = scmp.eq.s32.totalorder %s28, 2
      %p57 = por %p55, %p56
      %p58 = scmp.ne.s32.totalorder %s50, %s53
      %p59 = scmp.eq.s32.totalorder %s28, 0
      %p60 = por %p58, %p59
      %p61 = scmp.ne.s32.totalorder %s50, %s53
      %p62 = scmp.eq.s32.totalorder %s33, 2
      %p63 = por %p61, %p62
      %p64 = scmp.ne.s32.totalorder %s53, %s54
      %p65 = scmp.eq.s32.totalorder %s33, 0
      %p66 = por %p64, %p65
      %p67 = scmp.ne.s32.totalorder %s53, %s54
      %p68 = scmp.eq.s32.totalorder %s34, 2
      %p69 = por %p67, %p68
      %p71 = scmp.ne.s32.totalorder %s54, %s70
      %p72 = scmp.eq.s32.totalorder %s34, 0
      %p73 = por %p71, %p72
      %s74 = ssub.s32 %s35, %s47
      %p75 = scmp.eq.s32.totalorder %s74, 0
      %s77 = sadd.s32 %s76, 1
      %s78 = scalar_select %p75, %s76, %s77
      %p81 = pneg %p75
      %p82 = scmp.eq.s32.totalorder %s28, 2
      %p83 = por %p81, %p82
      %p84 = scmp.ne.s32.totalorder %s76, %s79
      %p85 = scmp.eq.s32.totalorder %s28, 0
      %p86 = por %p84, %p85
      %p87 = scmp.ne.s32.totalorder %s76, %s79
      %p88 = scmp.eq.s32.totalorder %s33, 2
      %p89 = por %p87, %p88
      %p90 = scmp.ne.s32.totalorder %s79, %s80
      %p91 = scmp.eq.s32.totalorder %s33, 0
      %p92 = por %p90, %p91
      %p93 = scmp.ne.s32.totalorder %s79, %s80
      %p94 = scmp.eq.s32.totalorder %s34, 2
      %p95 = por %p93, %p94
      %p97 = scmp.ne.s32.totalorder %s80, %s96
      %p98 = scmp.eq.s32.totalorder %s34, 0
      %p99 = por %p97, %p98
      %s100 = ssub.s32 %s35, %s47
      %p101 = scmp.eq.s32.totalorder %s100, 0
      %s103 = sadd.s32 %s102, 1
      %s104 = scalar_select %p101, %s102, %s103
      %p107 = pneg %p101
      %p108 = scmp.eq.s32.totalorder %s28, 2
      %p109 = por %p107, %p108
      %p110 = scmp.ne.s32.totalorder %s102, %s105
      %p111 = scmp.eq.s32.totalorder %s28, 0
      %p112 = por %p110, %p111
      %p113 = scmp.ne.s32.totalorder %s102, %s105
      %p114 = scmp.eq.s32.totalorder %s33, 2
      %p115 = por %p113, %p114
      %p116 = scmp.ne.s32.totalorder %s105, %s106
      %p117 = scmp.eq.s32.totalorder %s33, 0
      %p118 = por %p116, %p117
      %p119 = scmp.ne.s32.totalorder %s105, %s106
      %p120 = scmp.eq.s32.totalorder %s34, 2
      %p121 = por %p119, %p120
      %p123 = scmp.ne.s32.totalorder %s106, %s122
      %p124 = scmp.eq.s32.totalorder %s34, 0
      %p125 = por %p123, %p124
      %s126 = ssub.s32 %s35, %s47
      %p127 = scmp.eq.s32.totalorder %s126, 0
      %s129 = sadd.s32 %s128, 1
      %s130 = scalar_select %p127, %s128, %s129
      %p133 = pneg %p127
      %p134 = scmp.eq.s32.totalorder %s28, 2
      %p135 = por %p133, %p134
      %p136 = scmp.ne.s32.totalorder %s128, %s131
      %p137 = scmp.eq.s32.totalorder %s28, 0
      %p138 = por %p136, %p137
      %p139 = scmp.ne.s32.totalorder %s128, %s131
      %p140 = scmp.eq.s32.totalorder %s33, 2
      %p141 = por %p139, %p140
      %p142 = scmp.ne.s32.totalorder %s131, %s132
      %p143 = scmp.eq.s32.totalorder %s33, 0
      %p144 = por %p142, %p143
      %p145 = scmp.ne.s32.totalorder %s131, %s132
      %p146 = scmp.eq.s32.totalorder %s34, 2
      %p147 = por %p145, %p146
      %p149 = scmp.ne.s32.totalorder %s132, %s148
      %p150 = scmp.eq.s32.totalorder %s34, 0
      %p151 = por %p149, %p150
      %s152 = ssub.s32 %s35, %s47
      %p153 = scmp.eq.s32.totalorder %s152, 0
      %s155 = sadd.s32 %s154, 1
      %s156 = scalar_select %p153, %s154, %s155
      %p159 = pneg %p153
      %p160 = scmp.eq.s32.totalorder %s28, 2
      %p161 = por %p159, %p160
      %p162 = scmp.ne.s32.totalorder %s154, %s157
      %p163 = scmp.eq.s32.totalorder %s28, 0
      %p164 = por %p162, %p163
      %p165 = scmp.ne.s32.totalorder %s154, %s157
      %p166 = scmp.eq.s32.totalorder %s33, 2
      %p167 = por %p165, %p166
      %p168 = scmp.ne.s32.totalorder %s157, %s158
      %p169 = scmp.eq.s32.totalorder %s33, 0
      %p170 = por %p168, %p169
      %p171 = scmp.ne.s32.totalorder %s157, %s158
      %p172 = scmp.eq.s32.totalorder %s34, 2
      %p173 = por %p171, %p172
      %p175 = scmp.ne.s32.totalorder %s158, %s174
      %p176 = scmp.eq.s32.totalorder %s34, 0
      %p177 = por %p175, %p176
      %s178 = ssub.s32 %s35, %s47
      %p179 = scmp.eq.s32.totalorder %s178, 0
      %s181 = sadd.s32 %s180, 1
      %s182 = scalar_select %p179, %s180, %s181
      %p185 = pneg %p179
      %p186 = scmp.eq.s32.totalorder %s28, 2
      %p187 = por %p185, %p186
      %p188 = scmp.ne.s32.totalorder %s180, %s183
      %p189 = scmp.eq.s32.totalorder %s28, 0
      %p190 = por %p188, %p189
      %p191 = scmp.ne.s32.totalorder %s180, %s183
      %p192 = scmp.eq.s32.totalorder %s33, 2
      %p193 = por %p191, %p192
      %p194 = scmp.ne.s32.totalorder %s183, %s184
      %p195 = scmp.eq.s32.totalorder %s33, 0
      %p196 = por %p194, %p195
      %p197 = scmp.ne.s32.totalorder %s183, %s184
      %p198 = scmp.eq.s32.totalorder %s34, 2
      %p199 = por %p197, %p198
      %p201 = scmp.ne.s32.totalorder %s184, %s200
      %p202 = scmp.eq.s32.totalorder %s34, 0
      %p203 = por %p201, %p202
      %s204 = ssub.s32 %s35, %s47
      %p205 = scmp.eq.s32.totalorder %s204, 0
      %s207 = sadd.s32 %s206, 1
      %s208 = scalar_select %p205, %s206, %s207
      %p211 = pneg %p205
      %p212 = scmp.eq.s32.totalorder %s28, 2
      %p213 = por %p211, %p212
      %p214 = scmp.ne.s32.totalorder %s206, %s209
      %p215 = scmp.eq.s32.totalorder %s28, 0
      %p216 = por %p214, %p215
      %p217 = scmp.ne.s32.totalorder %s206, %s209
      %p218 = scmp.eq.s32.totalorder %s33, 2
      %p219 = por %p217, %p218
      %p220 = scmp.ne.s32.totalorder %s209, %s210
      %p221 = scmp.eq.s32.totalorder %s33, 0
      %p222 = por %p220, %p221
      %p223 = scmp.ne.s32.totalorder %s209, %s210
      %p224 = scmp.eq.s32.totalorder %s34, 2
      %p225 = por %p223, %p224
      %p227 = scmp.ne.s32.totalorder %s210, %s226
      %p228 = scmp.eq.s32.totalorder %s34, 0
      %p229 = por %p227, %p228
      %s230 = ssub.s32 %s35, %s47
      %p231 = scmp.eq.s32.totalorder %s230, 0
      %s233 = sadd.s32 %s232, 1
      %s234 = scalar_select %p231, %s232, %s233
      %p237 = pneg %p231
      %p238 = scmp.eq.s32.totalorder %s28, 2
      %p239 = por %p237, %p238
      %p240 = scmp.ne.s32.totalorder %s232, %s235
      %p241 = scmp.eq.s32.totalorder %s28, 0
      %p242 = por %p240, %p241
      %p243 = scmp.ne.s32.totalorder %s232, %s235
      %p244 = scmp.eq.s32.totalorder %s33, 2
      %p245 = por %p243, %p244
      %p246 = scmp.ne.s32.totalorder %s235, %s236
      %p247 = scmp.eq.s32.totalorder %s33, 0
      %p248 = por %p246, %p247
      %p249 = scmp.ne.s32.totalorder %s235, %s236
      %p250 = scmp.eq.s32.totalorder %s34, 2
      %p251 = por %p249, %p250
      %p253 = scmp.ne.s32.totalorder %s236, %s252
      %p254 = scmp.eq.s32.totalorder %s34, 0
      %p255 = por %p253, %p254
      %s256 = ssub.s32 %s35, %s47
      %p257 = scmp.eq.s32.totalorder %s256, 0
      %s259 = sadd.s32 %s258, 1
      %s260 = scalar_select %p257, %s258, %s259
      %p263 = pneg %p257
      %p264 = scmp.eq.s32.totalorder %s28, 2
      %p265 = por %p263, %p264
      %p266 = scmp.ne.s32.totalorder %s258, %s261
      %p267 = scmp.eq.s32.totalorder %s28, 0
      %p268 = por %p266, %p267
      %p269 = scmp.ne.s32.totalorder %s258, %s261
      %p270 = scmp.eq.s32.totalorder %s33, 2
      %p271 = por %p269, %p270
      %p272 = scmp.ne.s32.totalorder %s261, %s262
      %p273 = scmp.eq.s32.totalorder %s33, 0
      %p274 = por %p272, %p273
      %p275 = scmp.ne.s32.totalorder %s261, %s262
      %p276 = scmp.eq.s32.totalorder %s34, 2
      %p277 = por %p275, %p276
      %p279 = scmp.ne.s32.totalorder %s262, %s278
      %p280 = scmp.eq.s32.totalorder %s34, 0
      %p281 = por %p279, %p280
      %s282 = ssub.s32 %s36, %s43
      %s283 = ssub.s32 %s35, %s47
      %s284 = sor.u32 %s282, %s283
      %p285 = scmp.eq.s32.totalorder %s284, 0
      %s287 = sadd.s32 %s286, 1
      %s288 = scalar_select %p285, %s286, %s287
      %p291 = pneg %p285
      %p292 = scmp.eq.s32.totalorder %s28, 2
      %p293 = por %p291, %p292
      %p294 = scmp.ne.s32.totalorder %s286, %s289
      %p295 = scmp.eq.s32.totalorder %s28, 0
      %p296 = por %p294, %p295
      %p297 = scmp.ne.s32.totalorder %s286, %s289
      %p298 = scmp.eq.s32.totalorder %s33, 2
      %p299 = por %p297, %p298
      %p300 = scmp.ne.s32.totalorder %s289, %s290
      %p301 = scmp.eq.s32.totalorder %s33, 0
      %p302 = por %p300, %p301
      %p303 = scmp.ne.s32.totalorder %s289, %s290
      %p304 = scmp.eq.s32.totalorder %s34, 2
      %p305 = por %p303, %p304
      %p307 = scmp.ne.s32.totalorder %s290, %s306
      %p308 = scmp.eq.s32.totalorder %s34, 0
      %p309 = por %p307, %p308
      %p310 = scmp.le.s32.totalorder 1, %s28
      %p311 = scmp.lt.s32.totalorder %s28, 4
      %p312 = pnand %p310, %p311
      %p313 = pneg %p312
      // Predicated region
      $region9: #{tpu_custom_call.1} parent=5 // pred_check
        _
      $region10: #{tpu_custom_call.1} parent=5 // pred_check_branch
        %315 = sbr.rel (%p312) target = $region12
      $region11: #{tpu_custom_call.1} parent=5 // pred_region
        %s316 = ssub.s32 %s28, 1
        // Predicated region
        $region13: #{tpu_custom_call.1} parent=11 // pred_check
          %p317 = pneg %p66
        $region14: #{tpu_custom_call.1} parent=11 // pred_check_branch
          %319 = sbr.rel (%p317) target = $region16
        $region15: #{tpu_custom_call.1} parent=11 // pred_region
          %s321 = ssub.s32 128, 128
          %322 = vsyncadd [#allocation3], %s321
          %s323 = smul.addr %s38, 128
          %s324 = scalar_lea.hbm %s0, %s323
          %s326 = sshll.u32 [#allocation2], 4
          %s327 = int_to_ptr.vmem [resolvable:$true] %s326
          %329 = dma.hbm_to_vmem [thread:$0]  %s324, 128, %s327, [#allocation3]
        $region16: #{tpu_custom_call.1} parent=11 // pred_fallthru
          _
      $region12: #{tpu_custom_call.1} parent=5 // pred_fallthru
        _
      %p330 = scmp.lt.s32.totalorder %s28, 3
      // Predicated region
      $region17: #{tpu_custom_call.1} parent=5 // pred_check
        %p331 = pneg %p330
      $region18: #{tpu_custom_call.1} parent=5 // pred_check_branch
        %333 = sbr.rel (%p331) target = $region20
      $region19: #{tpu_custom_call.1} parent=5 // pred_region
        // Predicated region
        $region21: #{tpu_custom_call.1} parent=19 // pred_check
          %p334 = pneg %p86
        $region22: #{tpu_custom_call.1} parent=19 // pred_check_branch
          %336 = sbr.rel (%p334) target = $region24
        $region23: #{tpu_custom_call.1} parent=19 // pred_region
          %s337 = sand.u32 %s28, 1
          %s338 = scalar_lea.sflag [#allocation6], %s337
          %s339 = sand.u32 %s76, 1
          %s340 = smul.addr %s339, 16
          %s341 = scalar_lea.vmem [#allocation5], %s340
          %s343 = ssub.s32 256, 256
          %344 = vsyncadd %s338, %s343
          %s345 = smul.addr %s35, 2
          %s346 = smul.addr %s345, 128
          %s347 = scalar_lea.hbm %s1, %s346
          %s348 = sshll.u32 %s341, 4
          %s349 = int_to_ptr.vmem [resolvable:$true] %s348
          %354 = dma.hbm_to_vmem [thread:$0]  %s347, 256, %s349, %s338, 128, 128, 8
        $region24: #{tpu_custom_call.1} parent=19 // pred_fallthru
          _
        // Predicated region
        $region25: #{tpu_custom_call.1} parent=19 // pred_check
          %p355 = pneg %p112
        $region26: #{tpu_custom_call.1} parent=19 // pred_check_branch
          %357 = sbr.rel (%p355) target = $region28
        $region27: #{tpu_custom_call.1} parent=19 // pred_region
          %p358 = scmp.lt.s32.totalorder %s35, 2
          %s359 = scalar_select %p358, %s35, 2
          %s360 = scalar_lea.vmem %s2, %s359
        $region28: #{tpu_custom_call.1} parent=19 // pred_fallthru
          _
        // Predicated region
        $region29: #{tpu_custom_call.1} parent=19 // pred_check
          %p361 = pneg %p138
        $region30: #{tpu_custom_call.1} parent=19 // pred_check_branch
          %363 = sbr.rel (%p361) target = $region32
        $region31: #{tpu_custom_call.1} parent=19 // pred_region
          %s364 = sand.u32 %s28, 1
          %s365 = scalar_lea.sflag [#allocation6], %s364
          %s366 = sand.u32 %s128, 1
          %s367 = smul.addr %s366, 128
          %s368 = scalar_lea.vmem [#allocation7], %s367
          %s370 = ssub.s32 2048, 2048
          %371 = vsyncadd %s365, %s370
          %s372 = smul.addr %s35, 16
          %s373 = smul.addr %s372, 128
          %s374 = scalar_lea.hbm %s3, %s373
          %s375 = sshll.u32 %s368, 4
          %s376 = int_to_ptr.vmem [resolvable:$true] %s375
          %381 = dma.hbm_to_vmem [thread:$0]  %s374, 2048, %s376, %s365, 128, 128, 8
        $region32: #{tpu_custom_call.1} parent=19 // pred_fallthru
          _
        // Predicated region
        $region33: #{tpu_custom_call.1} parent=19 // pred_check
          %p382 = pneg %p164
        $region34: #{tpu_custom_call.1} parent=19 // pred_check_branch
          %384 = sbr.rel (%p382) target = $region36
        $region35: #{tpu_custom_call.1} parent=19 // pred_region
          %p385 = scmp.lt.s32.totalorder %s35, 2
          %s386 = scalar_select %p385, %s35, 2
          %s387 = scalar_lea.vmem %s4, %s386
        $region36: #{tpu_custom_call.1} parent=19 // pred_fallthru
          _
        // Predicated region
        $region37: #{tpu_custom_call.1} parent=19 // pred_check
          %p388 = pneg %p190
        $region38: #{tpu_custom_call.1} parent=19 // pred_check_branch
          %390 = sbr.rel (%p388) target = $region40
        $region39: #{tpu_custom_call.1} parent=19 // pred_region
          %s391 = sand.u32 %s28, 1
          %s392 = scalar_lea.sflag [#allocation9], %s391
          %s393 = sand.u32 %s180, 1
          %s394 = smul.addr %s393, 16
          %s395 = scalar_lea.vmem [#allocation8], %s394
          %s397 = ssub.s32 256, 256
          %398 = vsyncadd %s392, %s397
          %s399 = smul.addr %s35, 2
          %s400 = smul.addr %s399, 128
          %s401 = scalar_lea.hbm %s5, %s400
          %s402 = sshll.u32 %s395, 4
          %s403 = int_to_ptr.vmem [resolvable:$true] %s402
          %408 = dma.hbm_to_vmem [thread:$0]  %s401, 256, %s403, %s392, 128, 128, 8
        $region40: #{tpu_custom_call.1} parent=19 // pred_fallthru
          _
        // Predicated region
        $region41: #{tpu_custom_call.1} parent=19 // pred_check
          %p409 = pneg %p216
        $region42: #{tpu_custom_call.1} parent=19 // pred_check_branch
          %411 = sbr.rel (%p409) target = $region44
        $region43: #{tpu_custom_call.1} parent=19 // pred_region
          %s412 = sand.u32 %s28, 1
          %s413 = scalar_lea.sflag [#allocation9], %s412
          %s414 = sand.u32 %s206, 1
          %s415 = smul.addr %s414, 128
          %s416 = scalar_lea.vmem [#allocation10], %s415
          %s418 = ssub.s32 2048, 2048
          %419 = vsyncadd %s413, %s418
          %s420 = smul.addr %s35, 16
          %s421 = smul.addr %s420, 128
          %s422 = scalar_lea.hbm %s6, %s421
          %s423 = sshll.u32 %s416, 4
          %s424 = int_to_ptr.vmem [resolvable:$true] %s423
          %429 = dma.hbm_to_vmem [thread:$0]  %s422, 2048, %s424, %s413, 128, 128, 8
        $region44: #{tpu_custom_call.1} parent=19 // pred_fallthru
          _
        // Predicated region
        $region45: #{tpu_custom_call.1} parent=19 // pred_check
          %p430 = pneg %p242
        $region46: #{tpu_custom_call.1} parent=19 // pred_check_branch
          %432 = sbr.rel (%p430) target = $region48
        $region47: #{tpu_custom_call.1} parent=19 // pred_region
          %s433 = sand.u32 %s232, 1
          %s434 = scalar_lea.sflag [#allocation12], %s433
          %s435 = sand.u32 %s232, 1
          %s436 = smul.addr %s435, 128
          %s437 = scalar_lea.vmem [#allocation11], %s436
          %s439 = ssub.s32 2048, 2048
          %440 = vsyncadd %s434, %s439
          %s441 = smul.addr %s35, 16
          %s442 = smul.addr %s441, 128
          %s443 = scalar_lea.hbm %s7, %s442
          %s444 = sshll.u32 %s437, 4
          %s445 = int_to_ptr.vmem [resolvable:$true] %s444
          %450 = dma.hbm_to_vmem [thread:$0]  %s443, 2048, %s445, %s434, 128, 128, 8
        $region48: #{tpu_custom_call.1} parent=19 // pred_fallthru
          _
        // Predicated region
        $region49: #{tpu_custom_call.1} parent=19 // pred_check
          %p451 = pneg %p268
        $region50: #{tpu_custom_call.1} parent=19 // pred_check_branch
          %453 = sbr.rel (%p451) target = $region52
        $region51: #{tpu_custom_call.1} parent=19 // pred_region
          %p454 = scmp.lt.s32.totalorder %s35, 2
          %s455 = scalar_select %p454, %s35, 2
          %s456 = scalar_lea.vmem %s8, %s455
        $region52: #{tpu_custom_call.1} parent=19 // pred_fallthru
          _
      $region20: #{tpu_custom_call.1} parent=5 // pred_fallthru
        _
      %p457 = scmp.le.s32.totalorder 1, %s28
      %p458 = scmp.lt.s32.totalorder %s28, 4
      %p459 = pnand %p457, %p458
      %p460 = pneg %p459
      // Predicated region
      $region53: #{tpu_custom_call.1} parent=5 // pred_check
        _
      $region54: #{tpu_custom_call.1} parent=5 // pred_check_branch
        %462 = sbr.rel (%p459) target = $region56
      $region55: #{tpu_custom_call.1} parent=5 // pred_region
        %s463 = ssub.s32 %s28, 1
        // Predicated region
        $region57: #{tpu_custom_call.1} parent=55 // pred_check
          %p464 = pneg %p66
        $region58: #{tpu_custom_call.1} parent=55 // pred_check_branch
          %466 = sbr.rel (%p464) target = $region60
        $region59: #{tpu_custom_call.1} parent=55 // pred_region
          %467 = dma.done [#allocation3], 128
        $region60: #{tpu_custom_call.1} parent=55 // pred_fallthru
          _
        %s468 = sand.u32 %s33, 1
        %s469 = scalar_lea.sflag [#allocation6], %s468
        %s470 = sand.u32 %s79, 1
        %s471 = smul.addr %s470, 16
        %s472 = scalar_lea.vmem [#allocation5], %s471
        // Predicated region
        $region61: #{tpu_custom_call.1} parent=55 // pred_check
          %p473 = pneg %p92
        $region62: #{tpu_custom_call.1} parent=55 // pred_check_branch
          %475 = sbr.rel (%p473) target = $region64
        $region63: #{tpu_custom_call.1} parent=55 // pred_region
          %476 = dma.done %s469, 256
        $region64: #{tpu_custom_call.1} parent=55 // pred_fallthru
          _
        %s477 = sand.u32 %s33, 1
        %s478 = scalar_lea.sflag [#allocation6], %s477
        %s479 = sand.u32 %s131, 1
        %s480 = smul.addr %s479, 128
        %s481 = scalar_lea.vmem [#allocation7], %s480
        // Predicated region
        $region65: #{tpu_custom_call.1} parent=55 // pred_check
          %p482 = pneg %p144
        $region66: #{tpu_custom_call.1} parent=55 // pred_check_branch
          %484 = sbr.rel (%p482) target = $region68
        $region67: #{tpu_custom_call.1} parent=55 // pred_region
          %485 = dma.done %s478, 2048
        $region68: #{tpu_custom_call.1} parent=55 // pred_fallthru
          _
        %s486 = sand.u32 %s33, 1
        %s487 = scalar_lea.sflag [#allocation9], %s486
        %s488 = sand.u32 %s183, 1
        %s489 = smul.addr %s488, 16
        %s490 = scalar_lea.vmem [#allocation8], %s489
        // Predicated region
        $region69: #{tpu_custom_call.1} parent=55 // pred_check
          %p491 = pneg %p196
        $region70: #{tpu_custom_call.1} parent=55 // pred_check_branch
          %493 = sbr.rel (%p491) target = $region72
        $region71: #{tpu_custom_call.1} parent=55 // pred_region
          %494 = dma.done %s487, 256
        $region72: #{tpu_custom_call.1} parent=55 // pred_fallthru
          _
        %s495 = sand.u32 %s33, 1
        %s496 = scalar_lea.sflag [#allocation9], %s495
        %s497 = sand.u32 %s209, 1
        %s498 = smul.addr %s497, 128
        %s499 = scalar_lea.vmem [#allocation10], %s498
        // Predicated region
        $region73: #{tpu_custom_call.1} parent=55 // pred_check
          %p500 = pneg %p222
        $region74: #{tpu_custom_call.1} parent=55 // pred_check_branch
          %502 = sbr.rel (%p500) target = $region76
        $region75: #{tpu_custom_call.1} parent=55 // pred_region
          %503 = dma.done %s496, 2048
        $region76: #{tpu_custom_call.1} parent=55 // pred_fallthru
          _
        %s504 = sand.u32 %s235, 1
        %s505 = scalar_lea.sflag [#allocation12], %s504
        %s506 = sand.u32 %s235, 1
        %s507 = smul.addr %s506, 128
        %s508 = scalar_lea.vmem [#allocation11], %s507
        // Predicated region
        $region77: #{tpu_custom_call.1} parent=55 // pred_check
          %p509 = pneg %p248
        $region78: #{tpu_custom_call.1} parent=55 // pred_check_branch
          %511 = sbr.rel (%p509) target = $region80
        $region79: #{tpu_custom_call.1} parent=55 // pred_region
          %512 = dma.done %s505, 2048
        $region80: #{tpu_custom_call.1} parent=55 // pred_fallthru
          _
        %p513 = pneg %p66
        %p514 = pneg %p63
        %s515 = sand.u32 %s33, 1
        %s516 = scalar_lea.sflag [#allocation6], %s515
        %s517 = sand.u32 %s79, 1
        %s518 = smul.addr %s517, 16
        %s519 = scalar_lea.vmem [#allocation5], %s518
        %p520 = pneg %p92
        %p521 = pneg %p89
        %p522 = scmp.lt.s32.totalorder %s37, 2
        %s523 = scalar_select %p522, %s37, 2
        %s524 = scalar_lea.vmem %s2, %s523
        %p525 = pneg %p118
        %p526 = pneg %p115
        %s527 = sand.u32 %s33, 1
        %s528 = scalar_lea.sflag [#allocation6], %s527
        %s529 = sand.u32 %s131, 1
        %s530 = smul.addr %s529, 128
        %s531 = scalar_lea.vmem [#allocation7], %s530
        %p532 = pneg %p144
        %p533 = pneg %p141
        %p534 = scmp.lt.s32.totalorder %s37, 2
        %s535 = scalar_select %p534, %s37, 2
        %s536 = scalar_lea.vmem %s4, %s535
        %p537 = pneg %p170
        %p538 = pneg %p167
        %s539 = sand.u32 %s33, 1
        %s540 = scalar_lea.sflag [#allocation9], %s539
        %s541 = sand.u32 %s183, 1
        %s542 = smul.addr %s541, 16
        %s543 = scalar_lea.vmem [#allocation8], %s542
        %p544 = pneg %p196
        %p545 = pneg %p193
        %s546 = sand.u32 %s33, 1
        %s547 = scalar_lea.sflag [#allocation9], %s546
        %s548 = sand.u32 %s209, 1
        %s549 = smul.addr %s548, 128
        %s550 = scalar_lea.vmem [#allocation10], %s549
        %p551 = pneg %p222
        %p552 = pneg %p219
        %s553 = sand.u32 %s235, 1
        %s554 = scalar_lea.sflag [#allocation12], %s553
        %s555 = sand.u32 %s235, 1
        %s556 = smul.addr %s555, 128
        %s557 = scalar_lea.vmem [#allocation11], %s556
        %p558 = pneg %p248
        %p559 = pneg %p245
        %p560 = scmp.lt.s32.totalorder %s37, 2
        %s561 = scalar_select %p560, %s37, 2
        %s562 = scalar_lea.vmem %s8, %s561
        %p563 = pneg %p274
        %p564 = pneg %p271
        %p565 = pneg %p302
        %p566 = pneg %p299
        %s567 = sand.u32 %s289, 1
        %s568 = scalar_lea.sflag [#allocation4], %s567
        %s569 = sand.u32 %s289, 1
        %s570 = smul.addr %s569, 8
        %s571 = scalar_lea.vmem [#allocation13], %s570
        %p572 = scmp.lt.s32.totalorder %s37, 2
        %s573 = scalar_select %p572, %s37, 2
        %s574 = scalar_lea.vmem %s2, %s573
        %p575 = scmp.lt.s32.totalorder %s37, 2
        %s576 = scalar_select %p575, %s37, 2
        %s577 = scalar_lea.vmem %s4, %s576
        %p578 = scmp.lt.s32.totalorder %s37, 2
        %s579 = scalar_select %p578, %s37, 2
        %s580 = scalar_lea.vmem %s8, %s579
        %v581 = vld [vmem:[#allocation2] sm:$0xff]
        %v582 = vld [vmem:[%s490] sm:$0xff]
        %v583 = vld [vmem:[%s490 + $0x8] sm:$0xff]
        %v584 = vld [vmem:[%s580] sm:$0x1]
        %v586 = vlaneseq
        %v587 = vshrl.u32 %v586, 7
        %v588 = vsub.s32 0, %v587
        %v589 = vrot.slane %v584, %v588
        %vm591 = vcmask 130048
        %v593 = vsel %vm591, %v581, 0
        %595 = vmatprep.subr.mxu0 0.0
        %596 = vmatpush1.msra.mxu0 0.0
        %597 = vmatprep.subr.mxu0 0.0
        %598 = vmatpush1.msra.mxu0 0.0
        %599 = vmatprep.subr.mxu0 0.0
        %600 = vmatpush1.msra.mxu0 0.0
        %601 = vmatprep.subr.mxu0 0.0
        %602 = vmatpush1.msra.mxu0 0.0
        %603 = vmatprep.subr.mxu0 0.0
        %604 = vmatpush1.msra.mxu0 0.0
        %605 = vmatprep.subr.mxu0 0.0
        %606 = vmatpush1.msra.mxu0 0.0
        %607 = vmatprep.subr.mxu0 0.0
        %608 = vmatpush1.msra.mxu0 0.0
        %609 = vmatprep.subr.mxu0 0.0
        %610 = vmatpush1.msra.mxu0 0.0
        %611 = vmatprep.subr.mxu0 0.0
        %612 = vmatpush1.msra.mxu0 0.0
        %613 = vmatprep.subr.mxu0 0.0
        %614 = vmatpush1.msra.mxu0 0.0
        %615 = vmatprep.subr.mxu0 0.0
        %616 = vmatpush1.msra.mxu0 0.0
        %617 = vmatprep.subr.mxu0 0.0
        %618 = vmatpush1.msra.mxu0 0.0
        %619 = vmatprep.subr.mxu0 0.0
        %620 = vmatpush1.msra.mxu0 0.0
        %621 = vmatprep.subr.mxu0 0.0
        %622 = vmatpush1.msra.mxu0 0.0
        %623 = vmatprep.subr.mxu0 0.0
        %624 = vmatpush1.msra.mxu0 %v583
        %625 = vmatprep.subr.mxu0 0.0
        %626 = vmatpush1.msra.mxu0 %v582
        %627 = vmatprep.subr.mxu0 0.0
        %628 = vmatpush2.msra.mxu0 0.0
        %629 = vmatprep.subr.mxu0 0.0
        %630 = vmatpush2.msra.mxu0 0.0
        %631 = vmatprep.subr.mxu0 0.0
        %632 = vmatpush2.msra.mxu0 0.0
        %633 = vmatprep.subr.mxu0 0.0
        %634 = vmatpush2.msra.mxu0 0.0
        %635 = vmatprep.subr.mxu0 0.0
        %636 = vmatpush2.msra.mxu0 0.0
        %637 = vmatprep.subr.mxu0 0.0
        %638 = vmatpush2.msra.mxu0 0.0
        %639 = vmatprep.subr.mxu0 0.0
        %640 = vmatpush2.msra.mxu0 0.0
        %641 = vmatprep.subr.mxu0 0.0
        %642 = vmatpush2.msra.mxu0 0.0
        %643 = vmatprep.subr.mxu0 0.0
        %644 = vmatpush2.msra.mxu0 0.0
        %645 = vmatprep.subr.mxu0 0.0
        %646 = vmatpush2.msra.mxu0 0.0
        %647 = vmatprep.subr.mxu0 0.0
        %648 = vmatpush2.msra.mxu0 0.0
        %649 = vmatprep.subr.mxu0 0.0
        %650 = vmatpush2.msra.mxu0 0.0
        %651 = vmatprep.subr.mxu0 0.0
        %652 = vmatpush2.msra.mxu0 0.0
        %653 = vmatprep.subr.mxu0 0.0
        %654 = vmatpush2.msra.mxu0 0.0
        %655 = vmatprep.subr.mxu0 0.0
        %656 = vmatpush2.msra.mxu0 0.0
        %657 = vmatprep.subr.mxu0 0.0
        %658 = vmatpush2.msra.mxu0 0.0
        %659 = vmatprep.mubr.f32.mxu0 0.0
        %660 = vmatmul.mubr.f32.gmra.mxu0 %v593
        %v661 = vpop.f32.mrf.mxu0
        %v662 = vadd.f32 %v589, %v661
        %v663 = vpop.f32.mrf.mxu0
        %664 = vdwg.mxu0
        %v665 = vld [vmem:[%s472] sm:$0xff]
        %v666 = vld [vmem:[%s472 + $0x8] sm:$0xff]
        %v667 = vld [vmem:[%s574] sm:$0x1]
        %v669 = vlaneseq
        %v670 = vshrl.u32 %v669, 7
        %v671 = vsub.s32 0, %v670
        %v672 = vrot.slane %v667, %v671
        %674 = vmatprep.subr.mxu0 0.0
        %675 = vmatpush1.msra.mxu0 0.0
        %676 = vmatprep.subr.mxu0 0.0
        %677 = vmatpush1.msra.mxu0 0.0
        %678 = vmatprep.subr.mxu0 0.0
        %679 = vmatpush1.msra.mxu0 0.0
        %680 = vmatprep.subr.mxu0 0.0
        %681 = vmatpush1.msra.mxu0 0.0
        %682 = vmatprep.subr.mxu0 0.0
        %683 = vmatpush1.msra.mxu0 0.0
        %684 = vmatprep.subr.mxu0 0.0
        %685 = vmatpush1.msra.mxu0 0.0
        %686 = vmatprep.subr.mxu0 0.0
        %687 = vmatpush1.msra.mxu0 0.0
        %688 = vmatprep.subr.mxu0 0.0
        %689 = vmatpush1.msra.mxu0 0.0
        %690 = vmatprep.subr.mxu0 0.0
        %691 = vmatpush1.msra.mxu0 0.0
        %692 = vmatprep.subr.mxu0 0.0
        %693 = vmatpush1.msra.mxu0 0.0
        %694 = vmatprep.subr.mxu0 0.0
        %695 = vmatpush1.msra.mxu0 0.0
        %696 = vmatprep.subr.mxu0 0.0
        %697 = vmatpush1.msra.mxu0 0.0
        %698 = vmatprep.subr.mxu0 0.0
        %699 = vmatpush1.msra.mxu0 0.0
        %700 = vmatprep.subr.mxu0 0.0
        %701 = vmatpush1.msra.mxu0 0.0
        %702 = vmatprep.subr.mxu0 0.0
        %703 = vmatpush1.msra.mxu0 %v666
        %704 = vmatprep.subr.mxu0 0.0
        %705 = vmatpush1.msra.mxu0 %v665
        %706 = vmatprep.subr.mxu0 0.0
        %707 = vmatpush2.msra.mxu0 0.0
        %708 = vmatprep.subr.mxu0 0.0
        %709 = vmatpush2.msra.mxu0 0.0
        %710 = vmatprep.subr.mxu0 0.0
        %711 = vmatpush2.msra.mxu0 0.0
        %712 = vmatprep.subr.mxu0 0.0
        %713 = vmatpush2.msra.mxu0 0.0
        %714 = vmatprep.subr.mxu0 0.0
        %715 = vmatpush2.msra.mxu0 0.0
        %716 = vmatprep.subr.mxu0 0.0
        %717 = vmatpush2.msra.mxu0 0.0
        %718 = vmatprep.subr.mxu0 0.0
        %719 = vmatpush2.msra.mxu0 0.0
        %720 = vmatprep.subr.mxu0 0.0
        %721 = vmatpush2.msra.mxu0 0.0
        %722 = vmatprep.subr.mxu0 0.0
        %723 = vmatpush2.msra.mxu0 0.0
        %724 = vmatprep.subr.mxu0 0.0
        %725 = vmatpush2.msra.mxu0 0.0
        %726 = vmatprep.subr.mxu0 0.0
        %727 = vmatpush2.msra.mxu0 0.0
        %728 = vmatprep.subr.mxu0 0.0
        %729 = vmatpush2.msra.mxu0 0.0
        %730 = vmatprep.subr.mxu0 0.0
        %731 = vmatpush2.msra.mxu0 0.0
        %732 = vmatprep.subr.mxu0 0.0
        %733 = vmatpush2.msra.mxu0 0.0
        %734 = vmatprep.subr.mxu0 0.0
        %735 = vmatpush2.msra.mxu0 0.0
        %736 = vmatprep.subr.mxu0 0.0
        %737 = vmatpush2.msra.mxu0 0.0
        %738 = vmatprep.mubr.f32.mxu0 0.0
        %739 = vmatmul.mubr.f32.gmra.mxu0 %v593
        %v740 = vpop.f32.mrf.mxu0
        %v741 = vadd.f32 %v672, %v740
        %v742 = vpop.f32.mrf.mxu0
        %743 = vdwg.mxu0
        %v744 = vmul.f32 %v741, 0.01
        %v745 = vmax.f32 %v741, %v744
        %v746 = vld [vmem:[%s499] sm:$0xff]
        %v747 = vld [vmem:[%s499 + $0x8] sm:$0xff]
        %v748 = vld [vmem:[%s499 + $0x10] sm:$0xff]
        %v749 = vld [vmem:[%s499 + $0x18] sm:$0xff]
        %v750 = vld [vmem:[%s499 + $0x20] sm:$0xff]
        %v751 = vld [vmem:[%s499 + $0x28] sm:$0xff]
        %v752 = vld [vmem:[%s499 + $0x30] sm:$0xff]
        %v753 = vld [vmem:[%s499 + $0x38] sm:$0xff]
        %v754 = vld [vmem:[%s499 + $0x40] sm:$0xff]
        %v755 = vld [vmem:[%s499 + $0x48] sm:$0xff]
        %v756 = vld [vmem:[%s499 + $0x50] sm:$0xff]
        %v757 = vld [vmem:[%s499 + $0x58] sm:$0xff]
        %v758 = vld [vmem:[%s499 + $0x60] sm:$0xff]
        %v759 = vld [vmem:[%s499 + $0x68] sm:$0xff]
        %v760 = vld [vmem:[%s499 + $0x70] sm:$0xff]
        %v761 = vld [vmem:[%s499 + $0x78] sm:$0xff]
        %762 = vmatprep.subr.mxu0 0.0
        %763 = vmatpush1.msra.mxu0 %v761
        %764 = vmatprep.subr.mxu0 0.0
        %765 = vmatpush1.msra.mxu0 %v760
        %766 = vmatprep.subr.mxu0 0.0
        %767 = vmatpush1.msra.mxu0 %v759
        %768 = vmatprep.subr.mxu0 0.0
        %769 = vmatpush1.msra.mxu0 %v758
        %770 = vmatprep.subr.mxu0 0.0
        %771 = vmatpush1.msra.mxu0 %v757
        %772 = vmatprep.subr.mxu0 0.0
        %773 = vmatpush1.msra.mxu0 %v756
        %774 = vmatprep.subr.mxu0 0.0
        %775 = vmatpush1.msra.mxu0 %v755
        %776 = vmatprep.subr.mxu0 0.0
        %777 = vmatpush1.msra.mxu0 %v754
        %778 = vmatprep.subr.mxu0 0.0
        %779 = vmatpush1.msra.mxu0 %v753
        %780 = vmatprep.subr.mxu0 0.0
        %781 = vmatpush1.msra.mxu0 %v752
        %782 = vmatprep.subr.mxu0 0.0
        %783 = vmatpush1.msra.mxu0 %v751
        %784 = vmatprep.subr.mxu0 0.0
        %785 = vmatpush1.msra.mxu0 %v750
        %786 = vmatprep.subr.mxu0 0.0
        %787 = vmatpush1.msra.mxu0 %v749
        %788 = vmatprep.subr.mxu0 0.0
        %789 = vmatpush1.msra.mxu0 %v748
        %790 = vmatprep.subr.mxu0 0.0
        %791 = vmatpush1.msra.mxu0 %v747
        %792 = vmatprep.subr.mxu0 0.0
        %793 = vmatpush1.msra.mxu0 %v746
        %794 = vmatprep.subr.mxu0 0.0
        %795 = vmatpush2.msra.mxu0 0.0
        %796 = vmatprep.subr.mxu0 0.0
        %797 = vmatpush2.msra.mxu0 0.0
        %798 = vmatprep.subr.mxu0 0.0
        %799 = vmatpush2.msra.mxu0 0.0
        %800 = vmatprep.subr.mxu0 0.0
        %801 = vmatpush2.msra.mxu0 0.0
        %802 = vmatprep.subr.mxu0 0.0
        %803 = vmatpush2.msra.mxu0 0.0
        %804 = vmatprep.subr.mxu0 0.0
        %805 = vmatpush2.msra.mxu0 0.0
        %806 = vmatprep.subr.mxu0 0.0
        %807 = vmatpush2.msra.mxu0 0.0
        %808 = vmatprep.subr.mxu0 0.0
        %809 = vmatpush2.msra.mxu0 0.0
        %810 = vmatprep.subr.mxu0 0.0
        %811 = vmatpush2.msra.mxu0 0.0
        %812 = vmatprep.subr.mxu0 0.0
        %813 = vmatpush2.msra.mxu0 0.0
        %814 = vmatprep.subr.mxu0 0.0
        %815 = vmatpush2.msra.mxu0 0.0
        %816 = vmatprep.subr.mxu0 0.0
        %817 = vmatpush2.msra.mxu0 0.0
        %818 = vmatprep.subr.mxu0 0.0
        %819 = vmatpush2.msra.mxu0 0.0
        %820 = vmatprep.subr.mxu0 0.0
        %821 = vmatpush2.msra.mxu0 0.0
        %822 = vmatprep.subr.mxu0 0.0
        %823 = vmatpush2.msra.mxu0 0.0
        %824 = vmatprep.subr.mxu0 0.0
        %825 = vmatpush2.msra.mxu0 0.0
        %826 = vmatprep.mubr.f32.mxu0 0.0
        %827 = vmatmul.mubr.f32.gmra.mxu0 %v745
        %v828 = vpop.f32.mrf.mxu0
        %v829 = vadd.f32 0.0, %v828
        %v830 = vpop.f32.mrf.mxu0
        %831 = vdwg.mxu0
        %v832 = vadd.f32 %v662, %v829
        %v833 = vld [vmem:[%s481] sm:$0xff]
        %v834 = vld [vmem:[%s481 + $0x8] sm:$0xff]
        %v835 = vld [vmem:[%s481 + $0x10] sm:$0xff]
        %v836 = vld [vmem:[%s481 + $0x18] sm:$0xff]
        %v837 = vld [vmem:[%s481 + $0x20] sm:$0xff]
        %v838 = vld [vmem:[%s481 + $0x28] sm:$0xff]
        %v839 = vld [vmem:[%s481 + $0x30] sm:$0xff]
        %v840 = vld [vmem:[%s481 + $0x38] sm:$0xff]
        %v841 = vld [vmem:[%s481 + $0x40] sm:$0xff]
        %v842 = vld [vmem:[%s481 + $0x48] sm:$0xff]
        %v843 = vld [vmem:[%s481 + $0x50] sm:$0xff]
        %v844 = vld [vmem:[%s481 + $0x58] sm:$0xff]
        %v845 = vld [vmem:[%s481 + $0x60] sm:$0xff]
        %v846 = vld [vmem:[%s481 + $0x68] sm:$0xff]
        %v847 = vld [vmem:[%s481 + $0x70] sm:$0xff]
        %v848 = vld [vmem:[%s481 + $0x78] sm:$0xff]
        %v849 = vld [vmem:[%s577] sm:$0x1]
        %v851 = vlaneseq
        %v852 = vshrl.u32 %v851, 7
        %v853 = vsub.s32 0, %v852
        %v854 = vrot.slane %v849, %v853
        %856 = vmatprep.subr.mxu0 0.0
        %857 = vmatpush1.msra.mxu0 %v848
        %858 = vmatprep.subr.mxu0 0.0
        %859 = vmatpush1.msra.mxu0 %v847
        %860 = vmatprep.subr.mxu0 0.0
        %861 = vmatpush1.msra.mxu0 %v846
        %862 = vmatprep.subr.mxu0 0.0
        %863 = vmatpush1.msra.mxu0 %v845
        %864 = vmatprep.subr.mxu0 0.0
        %865 = vmatpush1.msra.mxu0 %v844
        %866 = vmatprep.subr.mxu0 0.0
        %867 = vmatpush1.msra.mxu0 %v843
        %868 = vmatprep.subr.mxu0 0.0
        %869 = vmatpush1.msra.mxu0 %v842
        %870 = vmatprep.subr.mxu0 0.0
        %871 = vmatpush1.msra.mxu0 %v841
        %872 = vmatprep.subr.mxu0 0.0
        %873 = vmatpush1.msra.mxu0 %v840
        %874 = vmatprep.subr.mxu0 0.0
        %875 = vmatpush1.msra.mxu0 %v839
        %876 = vmatprep.subr.mxu0 0.0
        %877 = vmatpush1.msra.mxu0 %v838
        %878 = vmatprep.subr.mxu0 0.0
        %879 = vmatpush1.msra.mxu0 %v837
        %880 = vmatprep.subr.mxu0 0.0
        %881 = vmatpush1.msra.mxu0 %v836
        %882 = vmatprep.subr.mxu0 0.0
        %883 = vmatpush1.msra.mxu0 %v835
        %884 = vmatprep.subr.mxu0 0.0
        %885 = vmatpush1.msra.mxu0 %v834
        %886 = vmatprep.subr.mxu0 0.0
        %887 = vmatpush1.msra.mxu0 %v833
        %888 = vmatprep.subr.mxu0 0.0
        %889 = vmatpush2.msra.mxu0 0.0
        %890 = vmatprep.subr.mxu0 0.0
        %891 = vmatpush2.msra.mxu0 0.0
        %892 = vmatprep.subr.mxu0 0.0
        %893 = vmatpush2.msra.mxu0 0.0
        %894 = vmatprep.subr.mxu0 0.0
        %895 = vmatpush2.msra.mxu0 0.0
        %896 = vmatprep.subr.mxu0 0.0
        %897 = vmatpush2.msra.mxu0 0.0
        %898 = vmatprep.subr.mxu0 0.0
        %899 = vmatpush2.msra.mxu0 0.0
        %900 = vmatprep.subr.mxu0 0.0
        %901 = vmatpush2.msra.mxu0 0.0
        %902 = vmatprep.subr.mxu0 0.0
        %903 = vmatpush2.msra.mxu0 0.0
        %904 = vmatprep.subr.mxu0 0.0
        %905 = vmatpush2.msra.mxu0 0.0
        %906 = vmatprep.subr.mxu0 0.0
        %907 = vmatpush2.msra.mxu0 0.0
        %908 = vmatprep.subr.mxu0 0.0
        %909 = vmatpush2.msra.mxu0 0.0
        %910 = vmatprep.subr.mxu0 0.0
        %911 = vmatpush2.msra.mxu0 0.0
        %912 = vmatprep.subr.mxu0 0.0
        %913 = vmatpush2.msra.mxu0 0.0
        %914 = vmatprep.subr.mxu0 0.0
        %915 = vmatpush2.msra.mxu0 0.0
        %916 = vmatprep.subr.mxu0 0.0
        %917 = vmatpush2.msra.mxu0 0.0
        %918 = vmatprep.subr.mxu0 0.0
        %919 = vmatpush2.msra.mxu0 0.0
        %920 = vmatprep.mubr.f32.mxu0 0.0
        %921 = vmatmul.mubr.f32.gmra.mxu0 %v745
        %v922 = vpop.f32.mrf.mxu0
        %v923 = vadd.f32 %v854, %v922
        %v924 = vpop.f32.mrf.mxu0
        %925 = vdwg.mxu0
        %v926 = vmul.f32 %v923, 0.01
        %v927 = vmax.f32 %v923, %v926
        %v928 = vld [vmem:[%s508] sm:$0xff]
        %v929 = vld [vmem:[%s508 + $0x8] sm:$0xff]
        %v930 = vld [vmem:[%s508 + $0x10] sm:$0xff]
        %v931 = vld [vmem:[%s508 + $0x18] sm:$0xff]
        %v932 = vld [vmem:[%s508 + $0x20] sm:$0xff]
        %v933 = vld [vmem:[%s508 + $0x28] sm:$0xff]
        %v934 = vld [vmem:[%s508 + $0x30] sm:$0xff]
        %v935 = vld [vmem:[%s508 + $0x38] sm:$0xff]
        %v936 = vld [vmem:[%s508 + $0x40] sm:$0xff]
        %v937 = vld [vmem:[%s508 + $0x48] sm:$0xff]
        %v938 = vld [vmem:[%s508 + $0x50] sm:$0xff]
        %v939 = vld [vmem:[%s508 + $0x58] sm:$0xff]
        %v940 = vld [vmem:[%s508 + $0x60] sm:$0xff]
        %v941 = vld [vmem:[%s508 + $0x68] sm:$0xff]
        %v942 = vld [vmem:[%s508 + $0x70] sm:$0xff]
        %v943 = vld [vmem:[%s508 + $0x78] sm:$0xff]
        %944 = vmatprep.subr.mxu0 0.0
        %945 = vmatpush1.msra.mxu0 %v943
        %946 = vmatprep.subr.mxu0 0.0
        %947 = vmatpush1.msra.mxu0 %v942
        %948 = vmatprep.subr.mxu0 0.0
        %949 = vmatpush1.msra.mxu0 %v941
        %950 = vmatprep.subr.mxu0 0.0
        %951 = vmatpush1.msra.mxu0 %v940
        %952 = vmatprep.subr.mxu0 0.0
        %953 = vmatpush1.msra.mxu0 %v939
        %954 = vmatprep.subr.mxu0 0.0
        %955 = vmatpush1.msra.mxu0 %v938
        %956 = vmatprep.subr.mxu0 0.0
        %957 = vmatpush1.msra.mxu0 %v937
        %958 = vmatprep.subr.mxu0 0.0
        %959 = vmatpush1.msra.mxu0 %v936
        %960 = vmatprep.subr.mxu0 0.0
        %961 = vmatpush1.msra.mxu0 %v935
        %962 = vmatprep.subr.mxu0 0.0
        %963 = vmatpush1.msra.mxu0 %v934
        %964 = vmatprep.subr.mxu0 0.0
        %965 = vmatpush1.msra.mxu0 %v933
        %966 = vmatprep.subr.mxu0 0.0
        %967 = vmatpush1.msra.mxu0 %v932
        %968 = vmatprep.subr.mxu0 0.0
        %969 = vmatpush1.msra.mxu0 %v931
        %970 = vmatprep.subr.mxu0 0.0
        %971 = vmatpush1.msra.mxu0 %v930
        %972 = vmatprep.subr.mxu0 0.0
        %973 = vmatpush1.msra.mxu0 %v929
        %974 = vmatprep.subr.mxu0 0.0
        %975 = vmatpush1.msra.mxu0 %v928
        %976 = vmatprep.subr.mxu0 0.0
        %977 = vmatpush2.msra.mxu0 0.0
        %978 = vmatprep.subr.mxu0 0.0
        %979 = vmatpush2.msra.mxu0 0.0
        %980 = vmatprep.subr.mxu0 0.0
        %981 = vmatpush2.msra.mxu0 0.0
        %982 = vmatprep.subr.mxu0 0.0
        %983 = vmatpush2.msra.mxu0 0.0
        %984 = vmatprep.subr.mxu0 0.0
        %985 = vmatpush2.msra.mxu0 0.0
        %986 = vmatprep.subr.mxu0 0.0
        %987 = vmatpush2.msra.mxu0 0.0
        %988 = vmatprep.subr.mxu0 0.0
        %989 = vmatpush2.msra.mxu0 0.0
        %990 = vmatprep.subr.mxu0 0.0
        %991 = vmatpush2.msra.mxu0 0.0
        %992 = vmatprep.subr.mxu0 0.0
        %993 = vmatpush2.msra.mxu0 0.0
        %994 = vmatprep.subr.mxu0 0.0
        %995 = vmatpush2.msra.mxu0 0.0
        %996 = vmatprep.subr.mxu0 0.0
        %997 = vmatpush2.msra.mxu0 0.0
        %998 = vmatprep.subr.mxu0 0.0
        %999 = vmatpush2.msra.mxu0 0.0
        %1000 = vmatprep.subr.mxu0 0.0
        %1001 = vmatpush2.msra.mxu0 0.0
        %1002 = vmatprep.subr.mxu0 0.0
        %1003 = vmatpush2.msra.mxu0 0.0
        %1004 = vmatprep.subr.mxu0 0.0
        %1005 = vmatpush2.msra.mxu0 0.0
        %1006 = vmatprep.subr.mxu0 0.0
        %1007 = vmatpush2.msra.mxu0 0.0
        %1008 = vmatprep.mubr.f32.mxu0 0.0
        %1009 = vmatmul.mubr.f32.gmra.mxu0 %v927
        %v1010 = vpop.f32.mrf.mxu0
        %v1011 = vadd.f32 0.0, %v1010
        %v1012 = vpop.f32.mrf.mxu0
        %1013 = vdwg.mxu0
        %v1014 = vadd.f32 %v832, %v1011
        %1015 = vst [vmem:[%s571] sm:$0xff] %v1014
        %s1016 = sand.u32 %s289, 1
        %s1017 = scalar_lea.sflag [#allocation4], %s1016
        %s1018 = sand.u32 %s289, 1
        %s1019 = smul.addr %s1018, 8
        %s1020 = scalar_lea.vmem [#allocation13], %s1019
        // Predicated region
        $region81: #{tpu_custom_call.1} parent=55 // pred_check
          %p1021 = pneg %p299
        $region82: #{tpu_custom_call.1} parent=55 // pred_check_branch
          %1023 = sbr.rel (%p1021) target = $region84
        $region83: #{tpu_custom_call.1} parent=55 // pred_region
          %s1025 = ssub.s32 128, 128
          %1026 = vsyncadd %s1017, %s1025
          %s1027 = smul.addr %s38, 3
          %s1028 = sadd.s32 %s37, %s1027
          %s1029 = smul.addr %s1028, 128
          %s1030 = scalar_lea.hbm %s9, %s1029
          %s1032 = sshll.u32 %s1020, 4
          %s1033 = int_to_ptr.vmem [resolvable:$true] %s1032
          %1035 = dma.vmem_to_hbm [thread:$0]  %s1033, 128, %s1030, %s1017
        $region84: #{tpu_custom_call.1} parent=55 // pred_fallthru
          _
      $region56: #{tpu_custom_call.1} parent=5 // pred_fallthru
        _
      %p1036 = scmp.le.s32.totalorder 2, %s28
      // Predicated region
      $region85: #{tpu_custom_call.1} parent=5 // pred_check
        %p1037 = pneg %p1036
      $region86: #{tpu_custom_call.1} parent=5 // pred_check_branch
        %1039 = sbr.rel (%p1037) target = $region88
      $region87: #{tpu_custom_call.1} parent=5 // pred_region
        %s1040 = ssub.s32 %s28, 2
        // Predicated region
        $region89: #{tpu_custom_call.1} parent=87 // pred_check
          %p1041 = pneg %p305
        $region90: #{tpu_custom_call.1} parent=87 // pred_check_branch
          %1043 = sbr.rel (%p1041) target = $region92
        $region91: #{tpu_custom_call.1} parent=87 // pred_region
          %s1044 = sand.u32 %s290, 1
          %s1045 = scalar_lea.sflag [#allocation4], %s1044
          %s1046 = sand.u32 %s290, 1
          %s1047 = smul.addr %s1046, 8
          %s1048 = scalar_lea.vmem [#allocation13], %s1047
          %1049 = dma.done %s1045, 128
        $region92: #{tpu_custom_call.1} parent=87 // pred_fallthru
          _
      $region88: #{tpu_custom_call.1} parent=5 // pred_fallthru
        _
    $region6: #{tpu_custom_call.1} parent=1 // loop_footer
      %s32 = sadd.s32 1, %s28
    $region7: #{tpu_custom_call.1} parent=1 // loop_footer_branch
      %27 = sbr.rel target = $region3
    $region8: #{tpu_custom_call.1} parent=1 // loop_exit
      _
    %1050 = vsyncpa [#allocation3], 1
    %s1051 = scalar_lea.sflag [#allocation3], 1
    %1052 = vsyncpa %s1051, 1
    %1053 = vsyncpa [#allocation6], 1
    %s1054 = scalar_lea.sflag [#allocation6], 1
    %1055 = vsyncpa %s1054, 1
    %1056 = vsyncpa [#allocation9], 1
    %s1057 = scalar_lea.sflag [#allocation9], 1
    %1058 = vsyncpa %s1057, 1
    %1059 = vsyncpa [#allocation12], 1
    %s1060 = scalar_lea.sflag [#allocation12], 1
    %1061 = vsyncpa %s1060, 1
    %1062 = vsyncpa [#allocation4], 1
    %s1063 = scalar_lea.sflag [#allocation4], 1
    %1064 = vsyncpa %s1063, 1

</llo_original>
